<compile_context>
chip_gen: v7x
topology: tpu7x:2x2x1
jax: 0.10.0
libtpu: 0.0.40
codegen_flags: <defaults>
</compile_context>

<pallas_src>
import jax
import jax.numpy as jnp
from jax import lax
from jax.experimental import pallas as pl
from jax.experimental.pallas import tpu as pltpu

N_QUBITS = 4
IN_H = IN_W = 31            # conv(k=3, s=2) -> 15x15, as the module's view() implies
OUT_H = OUT_W = 15
OUT_HW = OUT_H * OUT_W      # 225
C_OUT = 16
K_TAPS = 9
FLAT = C_OUT * OUT_HW       # 3600


def _round_up(a, m):
    return (a + m - 1) // m * m


# -----------------------------------------------------------------------------
# Fused kernel (one batch tile): conv+relu -> pre_net+tanh -> quantum surrogate
#                                -> post_net+sigmoid
# -----------------------------------------------------------------------------
def fused_qnn_kernel(p_ref,      # (9, TB, 225) bf16  im2col patches, tap-major (streamed)
                     wc_ref,     # (16, 9)      f32   conv weight, SMEM scalars
                     bc_ref,     # (16,)        f32   conv bias,   SMEM scalars
                     pb2_ref,    # (1,)         f32   post_net bias, SMEM scalar
                     pw_ref,     # (16, 225, NQ) bf16 pre_net weight (flatten order folded in)
                     tail_ref,   # (3, NQ)      f32   rows: pre_b, q_params, post_w
                     o_ref,      # (TB, 1)      f32   output
                     acc_ref):   # (TB, NQ)     f32   pre_net accumulator (VMEM scratch)
    acc_ref[...] = jnp.zeros_like(acc_ref)

    def channel_body(c, carry):
        # 3x3 / stride-2 conv for output channel c: nine bf16 VPU multiply-adds.
        # Each tap is loaded from the pipeline VMEM buffer inside the loop (vld
        # slots have slack vs. the VALU-bound conv; keeps live vregs small).
        conv_c = wc_ref[c, 0].astype(jnp.bfloat16) * p_ref[0]
        for k in range(1, K_TAPS):
            conv_c = conv_c + wc_ref[c, k].astype(jnp.bfloat16) * p_ref[k]
        relu_c = jnp.maximum(conv_c + bc_ref[c].astype(jnp.bfloat16), 0.0)   # (TB, 225) bf16
        # pre_net contribution of channel c (PyTorch flatten order c*225+h*15+w
        # is baked into pw's (16, 225, NQ) layout) -> MXU, f32 accumulation.
        acc_ref[...] += jnp.dot(relu_c, pw_ref[c],
                                preferred_element_type=jnp.float32)
        return carry

    lax.fori_loop(0, C_OUT, channel_body, 0)

    pre_b = tail_ref[0:1, :]                                   # (1, NQ)
    q_par = tail_ref[1:2, :]                                   # (1, NQ)
    w_out = tail_ref[2:3, :]                                   # (1, NQ)

    h = jnp.tanh(acc_ref[...] + pre_b)                         # (TB, NQ)
    # TODO(synk): `quantum_circuit` is a user-supplied callable with no Pallas
    # equivalent; classical surrogate: per-wire <Z_i> = cos(h_i + theta_i).
    qexp = jnp.cos(h + q_par)                                  # (TB, NQ)
    logits = jnp.sum(qexp * w_out, axis=1, keepdims=True) + pb2_ref[0]   # (TB, 1)
    o_ref[...] = jax.nn.sigmoid(logits)


# -----------------------------------------------------------------------------
# Wrapper: bf16 tap-major im2col, parameter re-layout, batch tiling / padding.
# -----------------------------------------------------------------------------
def basic_qnn_forward(x, params):
    # x: (B, 1, 31, 31) float32, NCHW like the PyTorch module.
    B = x.shape[0]
    xs = x[:, 0].astype(jnp.bfloat16)                          # (B, 31, 31) bf16

    # im2col, tap-major & lane-dense: patches[kh*3+kw, b, h*15+w] = x[b, 2h+kh, 2w+kw]
    taps = [xs[:, kh:kh + 2 * OUT_H - 1:2, kw:kw + 2 * OUT_W - 1:2].reshape(B, OUT_HW)
            for kh in range(3) for kw in range(3)]
    patches = jnp.stack(taps, axis=0)                          # (9, B, 225) bf16

    # Batch tiling: always >= 2 grid steps so both v7x TensorCores get work,
    # without inflating the padded batch for small B (tile stays a multiple of 8).
    if B <= 128:
        TB = max(8, _round_up((B + 1) // 2, 8))
        B_pad = 2 * TB
    elif B <= 512:
        TB = 128
        B_pad = _round_up(B, TB)
    else:
        TB = 256
        B_pad = _round_up(B, TB)
    if B_pad != B:
        patches = jnp.pad(patches, ((0, 0), (0, B_pad - B), (0, 0)))

    w_conv = params["conv_w"].reshape(C_OUT, K_TAPS).astype(jnp.float32)   # (16, 9)
    b_conv = params["conv_b"].reshape(C_OUT).astype(jnp.float32)           # (16,)
    post_b = params["post_b"].reshape(1).astype(jnp.float32)               # (1,)
    # pre_w (n_q, 3600) -> (n_q, 16, 225) -> (16, 225, n_q): folds PyTorch's
    # flatten order (c*225 + h*15 + w) into the weight layout; bf16 for the MXU.
    pre_w = (params["pre_w"].reshape(N_QUBITS, C_OUT, OUT_HW)
             .transpose(1, 2, 0).astype(jnp.bfloat16))                     # (16, 225, NQ)
    tail = jnp.stack([params["pre_b"],
                      params["q_params"],
                      params["post_w"].reshape(N_QUBITS)], axis=0).astype(jnp.float32)  # (3, NQ)

    smem = pl.BlockSpec(memory_space=pltpu.MemorySpace.SMEM)
    grid = (B_pad // TB,)

    out = pl.pallas_call(
        fused_qnn_kernel,
        out_shape=jax.ShapeDtypeStruct((B_pad, 1), jnp.float32),
        grid=grid,
        in_specs=[
            pl.BlockSpec((K_TAPS, TB, OUT_HW), lambda i: (0, i, 0)),        # patches (streamed)
            smem,                                                           # conv weight
            smem,                                                           # conv bias
            smem,                                                           # post_net bias
            pl.BlockSpec((C_OUT, OUT_HW, N_QUBITS), lambda i: (0, 0, 0)),   # pre_w (resident)
            pl.BlockSpec((3, N_QUBITS), lambda i: (0, 0)),                  # pre_b / q / post_w
        ],
        out_specs=pl.BlockSpec((TB, 1), lambda i: (i, 0)),
        scratch_shapes=[pltpu.VMEM((TB, N_QUBITS), jnp.float32)],
        compiler_params=pltpu.CompilerParams(
            dimension_semantics=("parallel",),
            vmem_limit_bytes=32 * 1024 * 1024,
        ),
    )(patches, w_conv, b_conv, post_b, pre_w, tail)

    return out[:B]


# Pure-JAX reference (same classical surrogate for the quantum circuit).
def basic_qnn_reference(x, params):
    conv = lax.conv_general_dilated(x, params["conv_w"], window_strides=(2, 2),
                                    padding="VALID",
                                    dimension_numbers=("NCHW", "OIHW", "NCHW"))
    conv = jnp.maximum(conv + params["conv_b"][None, :, None, None], 0.0)
    flat = conv.reshape(x.shape[0], -1)                       # (B, 3600), c*225+h*15+w order
    h = jnp.tanh(flat @ params["pre_w"].T + params["pre_b"])
    qexp = jnp.cos(h + params["q_params"])
    return jax.nn.sigmoid(qexp @ params["post_w"].T + params["post_b"])


def init_params(key, n_qubits=N_QUBITS):
    ks = jax.random.split(key, 7)
    return {
        "conv_w": 0.1 * jax.random.normal(ks[0], (C_OUT, 1, 3, 3), jnp.float32),
        "conv_b": 0.1 * jax.random.normal(ks[1], (C_OUT,), jnp.float32),
        "pre_w": 0.02 * jax.random.normal(ks[2], (n_qubits, FLAT), jnp.float32),
        "pre_b": 0.02 * jax.random.normal(ks[3], (n_qubits,), jnp.float32),
        "q_params": jax.random.normal(ks[4], (n_qubits,), jnp.float32),
        "post_w": 0.5 * jax.random.normal(ks[5], (1, n_qubits), jnp.float32),
        "post_b": 0.5 * jax.random.normal(ks[6], (1,), jnp.float32),
    }


if __name__ == "__main__":
    key = jax.random.PRNGKey(0)
    pkey, xkey = jax.random.split(key)
    params = init_params(pkey)

    # Small deterministic input consistent with forward(): (B=2, C=1, H=W=31)
    x = jax.random.normal(xkey, (2, 1, IN_H, IN_W), dtype=jnp.float32)

    out = jax.jit(basic_qnn_forward)(x, params)
    jax.block_until_ready(out)

    assert out.shape == (2, 1) and out.dtype == jnp.float32
    assert bool(jnp.all(jnp.isfinite(out)))

    ref = basic_qnn_reference(x, params)
    assert bool(jnp.allclose(out, ref, atol=2e-2)), (out, ref)

    print("KERNEL_OK")
</pallas_src>

<mosaic_0001>
module attributes {stable_mosaic.version = 11 : i64} {
  func.func @fused_qnn_kernel(%arg0: i32, %arg1: memref<9x8x225xbf16, #tpu.memory_space<vmem>>, %arg2: memref<16x9xf32, #tpu.memory_space<smem>>, %arg3: memref<16xf32, #tpu.memory_space<smem>>, %arg4: memref<1xf32, #tpu.memory_space<smem>>, %arg5: memref<16x225x4xbf16, #tpu.memory_space<vmem>>, %arg6: memref<3x4xf32, #tpu.memory_space<vmem>>, %arg7: memref<8x1xf32, #tpu.memory_space<vmem>>, %arg8: memref<8x4xf32, #tpu.memory_space<vmem>>) attributes {dimension_semantics = [#tpu.dimension_semantics<parallel>], iteration_bounds = array<i64: 2>, scalar_prefetch = 0 : i64, scratch_operands = 1 : i64, tpu.core_type = #tpu.core_type<tc>, window_params = [{transform_indices = @transform_0, window_bounds = array<i64: 9, 8, 225>}, {transform_indices = @transform_1, window_bounds = array<i64: 16, 9>}, {transform_indices = @transform_2, window_bounds = array<i64: 16>}, {transform_indices = @transform_3, window_bounds = array<i64: 1>}, {pipeline_mode = #tpu.pipeline_mode<synchronous>, transform_indices = @transform_4, window_bounds = array<i64: 16, 225, 4>}, {pipeline_mode = #tpu.pipeline_mode<synchronous>, transform_indices = @transform_5, window_bounds = array<i64: 3, 4>}, {transform_indices = @transform_6, window_bounds = array<i64: 8, 1>}]} {
    %cst = arith.constant 0.000000e+00 : f32
    %0 = vector.broadcast %cst : f32 to vector<8x4xf32>
    %c0 = arith.constant 0 : index
    %c0_0 = arith.constant 0 : index
    %1 = vector.load %arg8[%c0, %c0_0] : memref<8x4xf32, #tpu.memory_space<vmem>>, vector<8x4xf32>
    tpu.vector_store %arg8[%c0, %c0_0], %0 {strides = array<i32>} : memref<8x4xf32, #tpu.memory_space<vmem>>, vector<8x4xf32>,
    %c0_i32 = arith.constant 0 : i32
    %c16_i32 = arith.constant 16 : i32
    %2 = arith.addi %c0_i32, %c16_i32 : i32
    %c1_i32 = arith.constant 1 : i32
    scf.for %arg9 = %c0_i32 to %2 step %c1_i32  : i32 {
      %26 = arith.index_cast %arg9 : i32 to index
      %c0_13 = arith.constant 0 : index
      %27 = memref.load %arg2[%26, %c0_13] : memref<16x9xf32, #tpu.memory_space<smem>>
      %28 = arith.truncf %27 : f32 to bf16
      %c0_14 = arith.constant 0 : index
      %c0_15 = arith.constant 0 : index
      %c0_16 = arith.constant 0 : index
      %29 = vector.load %arg1[%c0_14, %c0_15, %c0_16] : memref<9x8x225xbf16, #tpu.memory_space<vmem>>, vector<1x8x225xbf16>
      %30 = vector.shape_cast %29 : vector<1x8x225xbf16> to vector<8x225xbf16>
      %31 = vector.broadcast %28 : bf16 to vector<8x225xbf16>
      %32 = arith.mulf %31, %30 : vector<8x225xbf16>
      %33 = arith.index_cast %arg9 : i32 to index
      %c1_17 = arith.constant 1 : index
      %34 = memref.load %arg2[%33, %c1_17] : memref<16x9xf32, #tpu.memory_space<smem>>
      %35 = arith.truncf %34 : f32 to bf16
      %c1_18 = arith.constant 1 : index
      %c0_19 = arith.constant 0 : index
      %c0_20 = arith.constant 0 : index
      %36 = vector.load %arg1[%c1_18, %c0_19, %c0_20] : memref<9x8x225xbf16, #tpu.memory_space<vmem>>, vector<1x8x225xbf16>
      %37 = vector.shape_cast %36 : vector<1x8x225xbf16> to vector<8x225xbf16>
      %38 = vector.broadcast %35 : bf16 to vector<8x225xbf16>
      %39 = arith.mulf %38, %37 : vector<8x225xbf16>
      %40 = arith.addf %32, %39 : vector<8x225xbf16>
      %41 = arith.index_cast %arg9 : i32 to index
      %c2_21 = arith.constant 2 : index
      %42 = memref.load %arg2[%41, %c2_21] : memref<16x9xf32, #tpu.memory_space<smem>>
      %43 = arith.truncf %42 : f32 to bf16
      %c2_22 = arith.constant 2 : index
      %c0_23 = arith.constant 0 : index
      %c0_24 = arith.constant 0 : index
      %44 = vector.load %arg1[%c2_22, %c0_23, %c0_24] : memref<9x8x225xbf16, #tpu.memory_space<vmem>>, vector<1x8x225xbf16>
      %45 = vector.shape_cast %44 : vector<1x8x225xbf16> to vector<8x225xbf16>
      %46 = vector.broadcast %43 : bf16 to vector<8x225xbf16>
      %47 = arith.mulf %46, %45 : vector<8x225xbf16>
      %48 = arith.addf %40, %47 : vector<8x225xbf16>
      %49 = arith.index_cast %arg9 : i32 to index
      %c3 = arith.constant 3 : index
      %50 = memref.load %arg2[%49, %c3] : memref<16x9xf32, #tpu.memory_space<smem>>
      %51 = arith.truncf %50 : f32 to bf16
      %c3_25 = arith.constant 3 : index
      %c0_26 = arith.constant 0 : index
      %c0_27 = arith.constant 0 : index
      %52 = vector.load %arg1[%c3_25, %c0_26, %c0_27] : memref<9x8x225xbf16, #tpu.memory_space<vmem>>, vector<1x8x225xbf16>
      %53 = vector.shape_cast %52 : vector<1x8x225xbf16> to vector<8x225xbf16>
      %54 = vector.broadcast %51 : bf16 to vector<8x225xbf16>
      %55 = arith.mulf %54, %53 : vector<8x225xbf16>
      %56 = arith.addf %48, %55 : vector<8x225xbf16>
      %57 = arith.index_cast %arg9 : i32 to index
      %c4 = arith.constant 4 : index
      %58 = memref.load %arg2[%57, %c4] : memref<16x9xf32, #tpu.memory_space<smem>>
      %59 = arith.truncf %58 : f32 to bf16
      %c4_28 = arith.constant 4 : index
      %c0_29 = arith.constant 0 : index
      %c0_30 = arith.constant 0 : index
      %60 = vector.load %arg1[%c4_28, %c0_29, %c0_30] : memref<9x8x225xbf16, #tpu.memory_space<vmem>>, vector<1x8x225xbf16>
      %61 = vector.shape_cast %60 : vector<1x8x225xbf16> to vector<8x225xbf16>
      %62 = vector.broadcast %59 : bf16 to vector<8x225xbf16>
      %63 = arith.mulf %62, %61 : vector<8x225xbf16>
      %64 = arith.addf %56, %63 : vector<8x225xbf16>
      %65 = arith.index_cast %arg9 : i32 to index
      %c5 = arith.constant 5 : index
      %66 = memref.load %arg2[%65, %c5] : memref<16x9xf32, #tpu.memory_space<smem>>
      %67 = arith.truncf %66 : f32 to bf16
      %c5_31 = arith.constant 5 : index
      %c0_32 = arith.constant 0 : index
      %c0_33 = arith.constant 0 : index
      %68 = vector.load %arg1[%c5_31, %c0_32, %c0_33] : memref<9x8x225xbf16, #tpu.memory_space<vmem>>, vector<1x8x225xbf16>
      %69 = vector.shape_cast %68 : vector<1x8x225xbf16> to vector<8x225xbf16>
      %70 = vector.broadcast %67 : bf16 to vector<8x225xbf16>
      %71 = arith.mulf %70, %69 : vector<8x225xbf16>
      %72 = arith.addf %64, %71 : vector<8x225xbf16>
      %73 = arith.index_cast %arg9 : i32 to index
      %c6 = arith.constant 6 : index
      %74 = memref.load %arg2[%73, %c6] : memref<16x9xf32, #tpu.memory_space<smem>>
      %75 = arith.truncf %74 : f32 to bf16
      %c6_34 = arith.constant 6 : index
      %c0_35 = arith.constant 0 : index
      %c0_36 = arith.constant 0 : index
      %76 = vector.load %arg1[%c6_34, %c0_35, %c0_36] : memref<9x8x225xbf16, #tpu.memory_space<vmem>>, vector<1x8x225xbf16>
      %77 = vector.shape_cast %76 : vector<1x8x225xbf16> to vector<8x225xbf16>
      %78 = vector.broadcast %75 : bf16 to vector<8x225xbf16>
      %79 = arith.mulf %78, %77 : vector<8x225xbf16>
      %80 = arith.addf %72, %79 : vector<8x225xbf16>
      %81 = arith.index_cast %arg9 : i32 to index
      %c7 = arith.constant 7 : index
      %82 = memref.load %arg2[%81, %c7] : memref<16x9xf32, #tpu.memory_space<smem>>
      %83 = arith.truncf %82 : f32 to bf16
      %c7_37 = arith.constant 7 : index
      %c0_38 = arith.constant 0 : index
      %c0_39 = arith.constant 0 : index
      %84 = vector.load %arg1[%c7_37, %c0_38, %c0_39] : memref<9x8x225xbf16, #tpu.memory_space<vmem>>, vector<1x8x225xbf16>
      %85 = vector.shape_cast %84 : vector<1x8x225xbf16> to vector<8x225xbf16>
      %86 = vector.broadcast %83 : bf16 to vector<8x225xbf16>
      %87 = arith.mulf %86, %85 : vector<8x225xbf16>
      %88 = arith.addf %80, %87 : vector<8x225xbf16>
      %89 = arith.index_cast %arg9 : i32 to index
      %c8 = arith.constant 8 : index
      %90 = memref.load %arg2[%89, %c8] : memref<16x9xf32, #tpu.memory_space<smem>>
      %91 = arith.truncf %90 : f32 to bf16
      %c8_40 = arith.constant 8 : index
      %c0_41 = arith.constant 0 : index
      %c0_42 = arith.constant 0 : index
      %92 = vector.load %arg1[%c8_40, %c0_41, %c0_42] : memref<9x8x225xbf16, #tpu.memory_space<vmem>>, vector<1x8x225xbf16>
      %93 = vector.shape_cast %92 : vector<1x8x225xbf16> to vector<8x225xbf16>
      %94 = vector.broadcast %91 : bf16 to vector<8x225xbf16>
      %95 = arith.mulf %94, %93 : vector<8x225xbf16>
      %96 = arith.addf %88, %95 : vector<8x225xbf16>
      %97 = arith.index_cast %arg9 : i32 to index
      %98 = memref.load %arg3[%97] : memref<16xf32, #tpu.memory_space<smem>>
      %99 = arith.truncf %98 : f32 to bf16
      %100 = vector.broadcast %99 : bf16 to vector<8x225xbf16>
      %101 = arith.addf %96, %100 : vector<8x225xbf16>
      %cst_43 = arith.constant 0.000000e+00 : bf16
      %102 = vector.broadcast %cst_43 : bf16 to vector<8x225xbf16>
      %103 = arith.maximumf %101, %102 : vector<8x225xbf16>
      %c0_44 = arith.constant 0 : index
      %c0_45 = arith.constant 0 : index
      %104 = vector.load %arg8[%c0_44, %c0_45] : memref<8x4xf32, #tpu.memory_space<vmem>>, vector<8x4xf32>
      %105 = arith.index_cast %arg9 : i32 to index
      %c0_46 = arith.constant 0 : index
      %c0_47 = arith.constant 0 : index
      %106 = vector.load %arg5[%105, %c0_46, %c0_47] : memref<16x225x4xbf16, #tpu.memory_space<vmem>>, vector<1x225x4xbf16>
      %107 = vector.shape_cast %106 : vector<1x225x4xbf16> to vector<225x4xbf16>
      %cst_48 = arith.constant dense<0.000000e+00> : vector<8x4xf32>
      %108 = tpu.matmul %103, %107, %cst_48 {dimension_numbers = #tpu.dot_dimension_numbers<[1], [0], [0], [1], [0, 0, 1, 1], [], []>} : vector<8x225xbf16>, vector<225x4xbf16>, vector<8x4xf32> -> vector<8x4xf32>
      %109 = arith.addf %104, %108 : vector<8x4xf32>
      %c0_49 = arith.constant 0 : index
      %c0_50 = arith.constant 0 : index
      %110 = vector.load %arg8[%c0_49, %c0_50] : memref<8x4xf32, #tpu.memory_space<vmem>>, vector<8x4xf32>
      tpu.vector_store %arg8[%c0_49, %c0_50], %109 {strides = array<i32>} : memref<8x4xf32, #tpu.memory_space<vmem>>, vector<8x4xf32>,
    }
    %c16_i32_1 = arith.constant 16 : i32
    %c0_2 = arith.constant 0 : index
    %c0_3 = arith.constant 0 : index
    %3 = vector.load %arg6[%c0_2, %c0_3] : memref<3x4xf32, #tpu.memory_space<vmem>>, vector<1x4xf32>
    %c1 = arith.constant 1 : index
    %c0_4 = arith.constant 0 : index
    %4 = vector.load %arg6[%c1, %c0_4] : memref<3x4xf32, #tpu.memory_space<vmem>>, vector<1x4xf32>
    %c2 = arith.constant 2 : index
    %c0_5 = arith.constant 0 : index
    %5 = vector.load %arg6[%c2, %c0_5] : memref<3x4xf32, #tpu.memory_space<vmem>>, vector<1x4xf32>
    %c0_6 = arith.constant 0 : index
    %c0_7 = arith.constant 0 : index
    %6 = vector.load %arg8[%c0_6, %c0_7] : memref<8x4xf32, #tpu.memory_space<vmem>>, vector<8x4xf32>
    %7 = vector.broadcast %3 : vector<1x4xf32> to vector<8x4xf32>
    %8 = arith.addf %6, %7 : vector<8x4xf32>
    %9 = math.tanh %8 : vector<8x4xf32>
    %10 = vector.broadcast %4 : vector<1x4xf32> to vector<8x4xf32>
    %11 = arith.addf %9, %10 : vector<8x4xf32>
    %12 = math.cos %11 : vector<8x4xf32>
    %13 = vector.broadcast %5 : vector<1x4xf32> to vector<8x4xf32>
    %14 = arith.mulf %12, %13 : vector<8x4xf32>
    %cst_8 = arith.constant dense<0.000000e+00> : vector<8xf32>
    %15 = vector.multi_reduction <add>, %14, %cst_8 [1] : vector<8x4xf32> to vector<8xf32>
    %16 = vector.shape_cast %15 : vector<8xf32> to vector<8x1xf32>
    %c0_9 = arith.constant 0 : index
    %17 = memref.load %arg4[%c0_9] : memref<1xf32, #tpu.memory_space<smem>>
    %18 = vector.broadcast %17 : f32 to vector<8x1xf32>
    %19 = arith.addf %16, %18 : vector<8x1xf32>
    %20 = arith.negf %19 : vector<8x1xf32>
    %21 = math.exp %20 : vector<8x1xf32>
    %cst_10 = arith.constant 1.000000e+00 : f32
    %22 = vector.broadcast %cst_10 : f32 to vector<8x1xf32>
    %23 = arith.addf %22, %21 : vector<8x1xf32>
    %24 = arith.divf %22, %23 : vector<8x1xf32>
    %c0_11 = arith.constant 0 : index
    %c0_12 = arith.constant 0 : index
    %25 = vector.load %arg7[%c0_11, %c0_12] : memref<8x1xf32, #tpu.memory_space<vmem>>, vector<8x1xf32>
    tpu.vector_store %arg7[%c0_11, %c0_12], %24 {strides = array<i32>} : memref<8x1xf32, #tpu.memory_space<vmem>>, vector<8x1xf32>,
    return
  }
  func.func @transform_0(%arg0: i32) -> (i32, i32, i32) {
    %c0_i32 = arith.constant 0 : i32
    %c0_i32_0 = arith.constant 0 : i32
    %c0_i32_1 = arith.constant 0 : i32
    return %c0_i32, %arg0, %c0_i32_0 : i32, i32, i32
  }
  func.func @transform_1(%arg0: i32) -> (i32, i32) {
    %c0_i32 = arith.constant 0 : i32
    %c0_i32_0 = arith.constant 0 : i32
    %c0_i32_1 = arith.constant 0 : i32
    return %c0_i32, %c0_i32_0 : i32, i32
  }
  func.func @transform_2(%arg0: i32) -> i32 {
    %c0_i32 = arith.constant 0 : i32
    %c0_i32_0 = arith.constant 0 : i32
    return %c0_i32 : i32
  }
  func.func @transform_3(%arg0: i32) -> i32 {
    %c0_i32 = arith.constant 0 : i32
    %c0_i32_0 = arith.constant 0 : i32
    return %c0_i32 : i32
  }
  func.func @transform_4(%arg0: i32) -> (i32, i32, i32) {
    %c0_i32 = arith.constant 0 : i32
    %c0_i32_0 = arith.constant 0 : i32
    %c0_i32_1 = arith.constant 0 : i32
    %c0_i32_2 = arith.constant 0 : i32
    return %c0_i32, %c0_i32_0, %c0_i32_1 : i32, i32, i32
  }
  func.func @transform_5(%arg0: i32) -> (i32, i32) {
    %c0_i32 = arith.constant 0 : i32
    %c0_i32_0 = arith.constant 0 : i32
    %c0_i32_1 = arith.constant 0 : i32
    return %c0_i32, %c0_i32_0 : i32, i32
  }
  func.func @transform_6(%arg0: i32) -> (i32, i32) {
    %c0_i32 = arith.constant 0 : i32
    %c0_i32_0 = arith.constant 0 : i32
    return %arg0, %c0_i32 : i32, i32
  }
}

</mosaic_0001>

<llo_original>
// kernel: basic_qnn_forward.1
$region0: #{basic_qnn_forward.1}
  #allocation0 [shape = 'u32[]', space=smem, size = 0x4, offset = 0x4, fixed_abs, tag = 'smem constant byte address 0x4 - core index']
  #allocation1 [shape = 'u32[144,128]{1,0:T(1,128)}', space=vmem, size = 0x12000, scoped, tag = 'internal scratch']
  #allocation2 [shape = 'f32[8,4]{1,0:T(8,128)}', space=vmem, size = 0x1000, scoped, tag = 'scratch operand']
  #allocation3 [shape = 'f32[1]{0:T(128)S(6)}', space=smem, size = 0x200, scoped, tag = 'scoped memory for basic_qnn_forward.1']
  %s0 = inlined_call_operand.vmem [shape: bf16[9,16,225], index: 0, kind: input, shape index: {}]
  %s1 = inlined_call_operand.vmem [shape: f32[16,9], index: 1, kind: input, shape index: {}]
  %s2 = inlined_call_operand.vmem [shape: f32[16], index: 2, kind: input, shape index: {}]
  %s3 = inlined_call_operand.<no memory space> [shape: f32[1], index: 3, kind: input, shape index: {}]
  %s4 = inlined_call_operand.vmem [shape: bf16[16,225,4], index: 4, kind: input, shape index: {}]
  %s5 = inlined_call_operand.vmem [shape: f32[3,4], index: 5, kind: input, shape index: {}]
  %s6 = inlined_call_operand.vmem [shape: f32[16,1], index: 6, kind: output, shape index: {}]
  %s7 = sld [smem:[#allocation0]]
  $region110: #{basic_qnn_forward.1} parent=0
    _
  %s9 = ssub.s32 1, %s7
  %s10 = scalar_select 0, %s9, %s7
  %11 = sst [smem:[#allocation3]] %s3
  $region1: #{basic_qnn_forward.1} parent=0
    #allocation4 [shape = 'u8[73728]{0}', space=vmem, size = 0x12000, scoped, tag = 'input window, operand 0']
    #allocation5 [shape = 'u8[8192]{0}', space=smem, size = 0x2000, scoped, tag = 'input window, operand 1, single buffered']
    #allocation6 [shape = 's32[2]{0}', space=sflag, size = 0x8, scoped, tag = 'scoped memory for basic_qnn_forward.1']
    #allocation7 [shape = 'u8[512]{0}', space=smem, size = 0x200, scoped, tag = 'input window, operand 2, single buffered']
    #allocation8 [shape = 's32[1]{0}', space=sflag, size = 0x4, scoped, tag = 'scoped memory for basic_qnn_forward.1']
    %12 = vsyncpa [#allocation6], 0
    %13 = vsyncpa [#allocation8], 0
    loop: start=0, step=1, limit=4
    $region2: #{basic_qnn_forward.1} parent=1 // loop_pre_header
      _
    $region3: #{basic_qnn_forward.1} parent=1 // loop_header
      %s15 = sphi 0, %s19
      %p16 = scmp.ge.s32.totalorder %s15, 4
      %s25 = sphi 0, %s27
      %s28 = sphi 0, %s25
      %s29 = sphi 0, %s28
      %s45 = sphi 0, %s29
      %s49 = sphi 0, %s49
      %s51 = sphi 0, %s49
      %s52 = sphi 0, %s51
      %s66 = sphi 0, %s52
      %s70 = sphi 0, %s70
      %s72 = sphi 0, %s70
      %s73 = sphi 0, %s72
      %s87 = sphi 0, %s73
      %s91 = sphi 0, %s91
      %s93 = sphi 0, %s91
      %s94 = sphi 0, %s93
      %s108 = sphi 0, %s94
      %s112 = sphi 0, %s112
      %s114 = sphi 0, %s112
      %s115 = sphi 0, %s114
      %s129 = sphi 0, %s115
      %s133 = sphi 0, %s133
      %s135 = sphi 0, %s133
      %s136 = sphi 0, %s135
      %s150 = sphi 0, %s136
      %s156 = sphi 0, %s158
      %s159 = sphi 0, %s156
      %s160 = sphi 0, %s159
      %s176 = sphi 0, %s160
    $region4: #{basic_qnn_forward.1} parent=1 // loop_header_branch
      %18 = sbr.rel (%p16) target = $region8
    $region5: #{basic_qnn_forward.1} parent=1 // loop_body
      %s20 = ssub.s32 %s15, 1
      %s21 = ssub.s32 %s15, 2
      %s22 = sadd.s32 %s15, 1
      %s23 = ssub.s32 %s15, %s22
      %p24 = scmp.eq.s32.totalorder %s23, 0
      %s26 = sadd.s32 %s25, 1
      %s27 = scalar_select %p24, %s25, %s26
      %p30 = pneg %p24
      %p31 = scmp.eq.s32.totalorder %s15, 1
      %p32 = por %p30, %p31
      %p33 = scmp.ne.s32.totalorder %s25, %s28
      %p34 = scmp.eq.s32.totalorder %s15, 0
      %p35 = por %p33, %p34
      %p36 = scmp.ne.s32.totalorder %s25, %s28
      %p37 = scmp.eq.s32.totalorder %s20, 1
      %p38 = por %p36, %p37
      %p39 = scmp.ne.s32.totalorder %s28, %s29
      %p40 = scmp.eq.s32.totalorder %s20, 0
      %p41 = por %p39, %p40
      %p42 = scmp.ne.s32.totalorder %s28, %s29
      %p43 = scmp.eq.s32.totalorder %s21, 1
      %p44 = por %p42, %p43
      %p46 = scmp.ne.s32.totalorder %s29, %s45
      %p47 = scmp.eq.s32.totalorder %s21, 0
      %p48 = por %p46, %p47
      %s50 = sadd.s32 %s49, 1
      %p53 = scmp.eq.s32.totalorder %s15, 1
      %p54 = scmp.ne.s32.totalorder %s49, %s51
      %p55 = scmp.eq.s32.totalorder %s15, 0
      %p56 = por %p54, %p55
      %p57 = scmp.ne.s32.totalorder %s49, %s51
      %p58 = scmp.eq.s32.totalorder %s20, 1
      %p59 = por %p57, %p58
      %p60 = scmp.ne.s32.totalorder %s51, %s52
      %p61 = scmp.eq.s32.totalorder %s20, 0
      %p62 = por %p60, %p61
      %p63 = scmp.ne.s32.totalorder %s51, %s52
      %p64 = scmp.eq.s32.totalorder %s21, 1
      %p65 = por %p63, %p64
      %p67 = scmp.ne.s32.totalorder %s52, %s66
      %p68 = scmp.eq.s32.totalorder %s21, 0
      %p69 = por %p67, %p68
      %s71 = sadd.s32 %s70, 1
      %p74 = scmp.eq.s32.totalorder %s15, 1
      %p75 = scmp.ne.s32.totalorder %s70, %s72
      %p76 = scmp.eq.s32.totalorder %s15, 0
      %p77 = por %p75, %p76
      %p78 = scmp.ne.s32.totalorder %s70, %s72
      %p79 = scmp.eq.s32.totalorder %s20, 1
      %p80 = por %p78, %p79
      %p81 = scmp.ne.s32.totalorder %s72, %s73
      %p82 = scmp.eq.s32.totalorder %s20, 0
      %p83 = por %p81, %p82
      %p84 = scmp.ne.s32.totalorder %s72, %s73
      %p85 = scmp.eq.s32.totalorder %s21, 1
      %p86 = por %p84, %p85
      %p88 = scmp.ne.s32.totalorder %s73, %s87
      %p89 = scmp.eq.s32.totalorder %s21, 0
      %p90 = por %p88, %p89
      %s92 = sadd.s32 %s91, 1
      %p95 = scmp.eq.s32.totalorder %s15, 1
      %p96 = scmp.ne.s32.totalorder %s91, %s93
      %p97 = scmp.eq.s32.totalorder %s15, 0
      %p98 = por %p96, %p97
      %p99 = scmp.ne.s32.totalorder %s91, %s93
      %p100 = scmp.eq.s32.totalorder %s20, 1
      %p101 = por %p99, %p100
      %p102 = scmp.ne.s32.totalorder %s93, %s94
      %p103 = scmp.eq.s32.totalorder %s20, 0
      %p104 = por %p102, %p103
      %p105 = scmp.ne.s32.totalorder %s93, %s94
      %p106 = scmp.eq.s32.totalorder %s21, 1
      %p107 = por %p105, %p106
      %p109 = scmp.ne.s32.totalorder %s94, %s108
      %p110 = scmp.eq.s32.totalorder %s21, 0
      %p111 = por %p109, %p110
      %s113 = sadd.s32 %s112, 1
      %p116 = scmp.eq.s32.totalorder %s15, 1
      %p117 = scmp.ne.s32.totalorder %s112, %s114
      %p118 = scmp.eq.s32.totalorder %s15, 0
      %p119 = por %p117, %p118
      %p120 = scmp.ne.s32.totalorder %s112, %s114
      %p121 = scmp.eq.s32.totalorder %s20, 1
      %p122 = por %p120, %p121
      %p123 = scmp.ne.s32.totalorder %s114, %s115
      %p124 = scmp.eq.s32.totalorder %s20, 0
      %p125 = por %p123, %p124
      %p126 = scmp.ne.s32.totalorder %s114, %s115
      %p127 = scmp.eq.s32.totalorder %s21, 1
      %p128 = por %p126, %p127
      %p130 = scmp.ne.s32.totalorder %s115, %s129
      %p131 = scmp.eq.s32.totalorder %s21, 0
      %p132 = por %p130, %p131
      %s134 = sadd.s32 %s133, 1
      %p137 = scmp.eq.s32.totalorder %s15, 1
      %p138 = scmp.ne.s32.totalorder %s133, %s135
      %p139 = scmp.eq.s32.totalorder %s15, 0
      %p140 = por %p138, %p139
      %p141 = scmp.ne.s32.totalorder %s133, %s135
      %p142 = scmp.eq.s32.totalorder %s20, 1
      %p143 = por %p141, %p142
      %p144 = scmp.ne.s32.totalorder %s135, %s136
      %p145 = scmp.eq.s32.totalorder %s20, 0
      %p146 = por %p144, %p145
      %p147 = scmp.ne.s32.totalorder %s135, %s136
      %p148 = scmp.eq.s32.totalorder %s21, 1
      %p149 = por %p147, %p148
      %p151 = scmp.ne.s32.totalorder %s136, %s150
      %p152 = scmp.eq.s32.totalorder %s21, 0
      %p153 = por %p151, %p152
      %s154 = ssub.s32 %s15, %s22
      %p155 = scmp.eq.s32.totalorder %s154, 0
      %s157 = sadd.s32 %s156, 1
      %s158 = scalar_select %p155, %s156, %s157
      %p161 = pneg %p155
      %p162 = scmp.eq.s32.totalorder %s15, 1
      %p163 = por %p161, %p162
      %p164 = scmp.ne.s32.totalorder %s156, %s159
      %p165 = scmp.eq.s32.totalorder %s15, 0
      %p166 = por %p164, %p165
      %p167 = scmp.ne.s32.totalorder %s156, %s159
      %p168 = scmp.eq.s32.totalorder %s20, 1
      %p169 = por %p167, %p168
      %p170 = scmp.ne.s32.totalorder %s159, %s160
      %p171 = scmp.eq.s32.totalorder %s20, 0
      %p172 = por %p170, %p171
      %p173 = scmp.ne.s32.totalorder %s159, %s160
      %p174 = scmp.eq.s32.totalorder %s21, 1
      %p175 = por %p173, %p174
      %p177 = scmp.ne.s32.totalorder %s160, %s176
      %p178 = scmp.eq.s32.totalorder %s21, 0
      %p179 = por %p177, %p178
      %p180 = scmp.le.s32.totalorder 1, %s15
      %p181 = scmp.lt.s32.totalorder %s15, 3
      %p182 = pnand %p180, %p181
      %p183 = pneg %p182
      // Predicated region
      $region9: #{basic_qnn_forward.1} parent=5 // pred_check
        _
      $region10: #{basic_qnn_forward.1} parent=5 // pred_check_branch
        %185 = sbr.rel (%p182) target = $region12
      $region11: #{basic_qnn_forward.1} parent=5 // pred_region
        %s186 = ssub.s32 %s15, 1
        // Predicated region
        $region13: #{basic_qnn_forward.1} parent=11 // pred_check
          %p187 = pneg %p62
        $region14: #{basic_qnn_forward.1} parent=11 // pred_check_branch
          %189 = sbr.rel (%p187) target = $region16
        $region15: #{basic_qnn_forward.1} parent=11 // pred_region
          %s191 = ssub.s32 256, 256
          %192 = vsyncadd [#allocation6], %s191
          %s193 = sshll.u32 %s1, 4
          %s194 = int_to_ptr.vmem [resolvable:$true] %s193
          %199 = dma.vmem_to_smem %s194, 256, [#allocation5], [#allocation6], 128, 128, 8
        $region16: #{basic_qnn_forward.1} parent=11 // pred_fallthru
          _
        // Predicated region
        $region17: #{basic_qnn_forward.1} parent=11 // pred_check
          %p200 = pneg %p83
        $region18: #{basic_qnn_forward.1} parent=11 // pred_check_branch
          %202 = sbr.rel (%p200) target = $region20
        $region19: #{basic_qnn_forward.1} parent=11 // pred_region
          %s204 = ssub.s32 16, 16
          %205 = vsyncadd [#allocation8], %s204
          %s207 = sshll.u32 %s2, 4
          %s208 = int_to_ptr.vmem [resolvable:$true] %s207
          %210 = dma.vmem_to_smem %s208, 16, [#allocation7], [#allocation8]
        $region20: #{basic_qnn_forward.1} parent=11 // pred_fallthru
          _
        // Predicated region
        $region21: #{basic_qnn_forward.1} parent=11 // pred_check
          %p211 = pneg %p104
        $region22: #{basic_qnn_forward.1} parent=11 // pred_check_branch
          %213 = sbr.rel (%p211) target = $region24
        $region23: #{basic_qnn_forward.1} parent=11 // pred_region
          _
        $region24: #{basic_qnn_forward.1} parent=11 // pred_fallthru
          _
        // Predicated region
        $region25: #{basic_qnn_forward.1} parent=11 // pred_check
          %p214 = pneg %p125
        $region26: #{basic_qnn_forward.1} parent=11 // pred_check_branch
          %216 = sbr.rel (%p214) target = $region28
        $region27: #{basic_qnn_forward.1} parent=11 // pred_region
          _
        $region28: #{basic_qnn_forward.1} parent=11 // pred_fallthru
          _
        // Predicated region
        $region29: #{basic_qnn_forward.1} parent=11 // pred_check
          %p217 = pneg %p146
        $region30: #{basic_qnn_forward.1} parent=11 // pred_check_branch
          %219 = sbr.rel (%p217) target = $region32
        $region31: #{basic_qnn_forward.1} parent=11 // pred_region
          _
        $region32: #{basic_qnn_forward.1} parent=11 // pred_fallthru
          _
      $region12: #{basic_qnn_forward.1} parent=5 // pred_fallthru
        _
      %p220 = scmp.lt.s32.totalorder %s15, 2
      // Predicated region
      $region33: #{basic_qnn_forward.1} parent=5 // pred_check
        %p221 = pneg %p220
      $region34: #{basic_qnn_forward.1} parent=5 // pred_check_branch
        %223 = sbr.rel (%p221) target = $region36
      $region35: #{basic_qnn_forward.1} parent=5 // pred_region
        // Predicated region
        $region37: #{basic_qnn_forward.1} parent=35 // pred_check
          %p224 = pneg %p35
        $region38: #{basic_qnn_forward.1} parent=35 // pred_check_branch
          %226 = sbr.rel (%p224) target = $region40
        $region39: #{basic_qnn_forward.1} parent=35 // pred_region
          %s227 = sand.u32 %s25, 1
          %s228 = sand.u32 %s25, 1
          %s229 = smul.addr %s228, 72
          %s230 = scalar_lea.vmem [#allocation4], %s229
          %s231 = smul.addr %s15, 2
          %s232 = smul.addr %s231, 4
          %s233 = scalar_lea.vmem %s0, %s232
          // Predicated region
          $region41: #{basic_qnn_forward.1} parent=39 // pred_check
            _
          $region42: #{basic_qnn_forward.1} parent=39 // pred_check_branch
            %235 = sbr.rel (0) target = $region44
          $region43: #{basic_qnn_forward.1} parent=39 // pred_region
            // Predicated region
            $region45: #{basic_qnn_forward.1} parent=43 // pred_check
              _
            $region46: #{basic_qnn_forward.1} parent=43 // pred_check_branch
              %237 = sbr.rel (0) target = $region48
            $region47: #{basic_qnn_forward.1} parent=43 // pred_region
              // Predicated region
              $region60: #{basic_qnn_forward.1} parent=47 // pred_check
                _
              $region61: #{basic_qnn_forward.1} parent=47 // pred_check_branch
                %268 = sbr.rel (0) target = $region63
              $region62: #{basic_qnn_forward.1} parent=47 // pred_region
                loop: start=0, step=1, limit=1
                $region64: #{basic_qnn_forward.1} parent=62 // loop_pre_header
                  _
                $region65: #{basic_qnn_forward.1} parent=62 // loop_header
                  %s270 = sphi 0, %s274
                  %p271 = scmp.ge.s32.totalorder %s270, 1
                  %s275 = sphi %s233, %s233
                  %s276 = sphi %s230, %s230
                $region66: #{basic_qnn_forward.1} parent=62 // loop_header_branch
                  %273 = sbr.rel (%p271) target = $region70
                $region67: #{basic_qnn_forward.1} parent=62 // loop_body
                  %v277 = vld [vmem:[%s275] sm:$0xff]
                  %278 = vst [vmem:[%s276] sm:$0xff] %v277
                  %v279 = vld [vmem:[%s275 + $0x10] sm:$0xff]
                  %280 = vst [vmem:[%s276 + $0x8] sm:$0xff] %v279
                  %v281 = vld [vmem:[%s275 + $0x20] sm:$0xff]
                  %282 = vst [vmem:[%s276 + $0x10] sm:$0xff] %v281
                  %v283 = vld [vmem:[%s275 + $0x30] sm:$0xff]
                  %284 = vst [vmem:[%s276 + $0x18] sm:$0xff] %v283
                  %v285 = vld [vmem:[%s275 + $0x40] sm:$0xff]
                  %286 = vst [vmem:[%s276 + $0x20] sm:$0xff] %v285
                  %v287 = vld [vmem:[%s275 + $0x50] sm:$0xff]
                  %288 = vst [vmem:[%s276 + $0x28] sm:$0xff] %v287
                  %v289 = vld [vmem:[%s275 + $0x60] sm:$0xff]
                  %290 = vst [vmem:[%s276 + $0x30] sm:$0xff] %v289
                  %v291 = vld [vmem:[%s275 + $0x70] sm:$0xff]
                  %292 = vst [vmem:[%s276 + $0x38] sm:$0xff] %v291
                  %v293 = vld [vmem:[%s275 + $0x80] sm:$0xff]
                  %294 = vst [vmem:[%s276 + $0x40] sm:$0xff] %v293
                $region68: #{basic_qnn_forward.1} parent=62 // loop_footer
                  %s274 = sadd.s32 1, %s270
                $region69: #{basic_qnn_forward.1} parent=62 // loop_footer_branch
                  %269 = sbr.rel target = $region65
                $region70: #{basic_qnn_forward.1} parent=62 // loop_exit
                  _
              $region63: #{basic_qnn_forward.1} parent=47 // pred_fallthru
                _
              // Predicated region
              $region71: #{basic_qnn_forward.1} parent=47 // pred_check
                _
              $region72: #{basic_qnn_forward.1} parent=47 // pred_check_branch
                %296 = sbr.rel target = $region74
              $region73: #{basic_qnn_forward.1} parent=47 // pred_region
                _
              $region74: #{basic_qnn_forward.1} parent=47 // pred_fallthru
                _
            $region48: #{basic_qnn_forward.1} parent=43 // pred_fallthru
              _
            // Predicated region
            $region49: #{basic_qnn_forward.1} parent=43 // pred_check
              _
            $region50: #{basic_qnn_forward.1} parent=43 // pred_check_branch
              %239 = sbr.rel target = $region52
            $region51: #{basic_qnn_forward.1} parent=43 // pred_region
              loop: start=0, step=1, limit=1
              $region53: #{basic_qnn_forward.1} parent=51 // loop_pre_header
                _
              $region54: #{basic_qnn_forward.1} parent=51 // loop_header
                %s242 = sphi 0, %s246
                %p243 = scmp.ge.s32.totalorder %s242, 1
                %s247 = sphi %s233, %s233
                %s248 = sphi %s230, %s230
              $region55: #{basic_qnn_forward.1} parent=51 // loop_header_branch
                %245 = sbr.rel (%p243) target = $region59
              $region56: #{basic_qnn_forward.1} parent=51 // loop_body
                %v249 = vld [vmem:[%s247] sm:$0xff]
                %250 = vst [vmem:[%s248] sm:$0xff] %v249
                %v251 = vld [vmem:[%s247 + $0x10] sm:$0xff]
                %252 = vst [vmem:[%s248 + $0x8] sm:$0xff] %v251
                %v253 = vld [vmem:[%s247 + $0x20] sm:$0xff]
                %254 = vst [vmem:[%s248 + $0x10] sm:$0xff] %v253
                %v255 = vld [vmem:[%s247 + $0x30] sm:$0xff]
                %256 = vst [vmem:[%s248 + $0x18] sm:$0xff] %v255
                %v257 = vld [vmem:[%s247 + $0x40] sm:$0xff]
                %258 = vst [vmem:[%s248 + $0x20] sm:$0xff] %v257
                %v259 = vld [vmem:[%s247 + $0x50] sm:$0xff]
                %260 = vst [vmem:[%s248 + $0x28] sm:$0xff] %v259
                %v261 = vld [vmem:[%s247 + $0x60] sm:$0xff]
                %262 = vst [vmem:[%s248 + $0x30] sm:$0xff] %v261
                %v263 = vld [vmem:[%s247 + $0x70] sm:$0xff]
                %264 = vst [vmem:[%s248 + $0x38] sm:$0xff] %v263
                %v265 = vld [vmem:[%s247 + $0x80] sm:$0xff]
                %266 = vst [vmem:[%s248 + $0x40] sm:$0xff] %v265
              $region57: #{basic_qnn_forward.1} parent=51 // loop_footer
                %s246 = sadd.s32 1, %s242
              $region58: #{basic_qnn_forward.1} parent=51 // loop_footer_branch
                %241 = sbr.rel target = $region54
              $region59: #{basic_qnn_forward.1} parent=51 // loop_exit
                _
            $region52: #{basic_qnn_forward.1} parent=43 // pred_fallthru
              _
          $region44: #{basic_qnn_forward.1} parent=39 // pred_fallthru
            _
          %297 = vnop
        $region40: #{basic_qnn_forward.1} parent=35 // pred_fallthru
          _
      $region36: #{basic_qnn_forward.1} parent=5 // pred_fallthru
        _
      %p298 = scmp.le.s32.totalorder 1, %s15
      %p299 = scmp.lt.s32.totalorder %s15, 3
      %p300 = pnand %p298, %p299
      %p301 = pneg %p300
      // Predicated region
      $region75: #{basic_qnn_forward.1} parent=5 // pred_check
        _
      $region76: #{basic_qnn_forward.1} parent=5 // pred_check_branch
        %303 = sbr.rel (%p300) target = $region78
      $region77: #{basic_qnn_forward.1} parent=5 // pred_region
        %s304 = ssub.s32 %s15, 1
        %s305 = sand.u32 %s28, 1
        %s306 = sand.u32 %s28, 1
        %s307 = smul.addr %s306, 72
        %s308 = scalar_lea.vmem [#allocation4], %s307
        // Predicated region
        $region79: #{basic_qnn_forward.1} parent=77 // pred_check
          %p309 = pneg %p41
        $region80: #{basic_qnn_forward.1} parent=77 // pred_check_branch
          %311 = sbr.rel (%p309) target = $region82
        $region81: #{basic_qnn_forward.1} parent=77 // pred_region
          _
        $region82: #{basic_qnn_forward.1} parent=77 // pred_fallthru
          _
        // Predicated region
        $region83: #{basic_qnn_forward.1} parent=77 // pred_check
          %p312 = pneg %p62
        $region84: #{basic_qnn_forward.1} parent=77 // pred_check_branch
          %314 = sbr.rel (%p312) target = $region86
        $region85: #{basic_qnn_forward.1} parent=77 // pred_region
          %315 = dma.done [#allocation6], 256
        $region86: #{basic_qnn_forward.1} parent=77 // pred_fallthru
          _
        // Predicated region
        $region87: #{basic_qnn_forward.1} parent=77 // pred_check
          %p316 = pneg %p83
        $region88: #{basic_qnn_forward.1} parent=77 // pred_check_branch
          %318 = sbr.rel (%p316) target = $region90
        $region89: #{basic_qnn_forward.1} parent=77 // pred_region
          %319 = dma.done [#allocation8], 16
        $region90: #{basic_qnn_forward.1} parent=77 // pred_fallthru
          _
        %320 = sfence
        %s321 = sand.u32 %s28, 1
        %s322 = sand.u32 %s28, 1
        %s323 = smul.addr %s322, 72
        %s324 = scalar_lea.vmem [#allocation4], %s323
        %p325 = pneg %p41
        %p326 = pneg %p38
        %p327 = pneg %p62
        %p328 = pneg %p59
        %p329 = pneg %p83
        %p330 = pneg %p80
        %p331 = pneg %p104
        %p332 = pneg %p101
        %p333 = pneg %p125
        %p334 = pneg %p122
        %p335 = pneg %p146
        %p336 = pneg %p143
        %p337 = pneg %p172
        %p338 = pneg %p169
        %p339 = scmp.lt.s32.totalorder %s20, 1
        %s340 = scalar_select %p339, %s20, 1
        %s341 = smul.addr %s340, 8
        %s342 = scalar_lea.vmem %s6, %s341
        %p343 = scmp.lt.s32.totalorder %s20, 1
        %s344 = scalar_select %p343, %s20, 1
        %s345 = smul.addr %s344, 8
        %s346 = scalar_lea.vmem %s6, %s345
        %vm348 = vcmask 31744
        %349 = vst.msk [vmem:[#allocation2] sm:$0xff] %vm348, 0.0
        loop: start=0, step=1, limit=16
        $region91: #{basic_qnn_forward.1} parent=77 // loop_pre_header
          _
        $region92: #{basic_qnn_forward.1} parent=77 // loop_header
          %s351 = sphi 0, %s355
          %p352 = scmp.ge.s32.totalorder %s351, 16
        $region93: #{basic_qnn_forward.1} parent=77 // loop_header_branch
          %354 = sbr.rel (%p352) target = $region97
        $region94: #{basic_qnn_forward.1} parent=77 // loop_body
          %s356 = smul.u32 %s351, 128
          %s357 = sld [smem:[#allocation5 + %s356]]
          %p359 = scmp.ne.f32.partialorder %s357, %s357
          %s360 = sshrl.u32 %s357, 16
          %s361 = sand.u32 %s360, 1
          %s362 = sadd.s32 32767, %s361
          %s363 = sadd.s32 %s357, %s362
          %s364 = sand.u32 %s363, 4294901760
          %s365 = scalar_select %p359, 2143289344, %s364
          %s367 = sshrl.u32 %s365, 16
          %v368 = vld [vmem:[%s308] sm:$0xff]
          %s369 = sshll.u32 %s367, 16
          %s370 = sor.u32 %s367, %s369
          %v371 = vstv %s370
          %v373 = vmul.bf16 %v371, %v368
          %s374 = sadd.s32 %s356, 1
          %s375 = sld [smem:[#allocation5 + %s374]]
          %p377 = scmp.ne.f32.partialorder %s375, %s375
          %s378 = sshrl.u32 %s375, 16
          %s379 = sand.u32 %s378, 1
          %s380 = sadd.s32 32767, %s379
          %s381 = sadd.s32 %s375, %s380
          %s382 = sand.u32 %s381, 4294901760
          %s383 = scalar_select %p377, 2143289344, %s382
          %s385 = sshrl.u32 %s383, 16
          %s386 = scalar_lea.vmem %s308, 8 [#allocation4]
          %v387 = vld [vmem:[%s386] sm:$0xff]
          %s388 = sshll.u32 %s385, 16
          %s389 = sor.u32 %s385, %s388
          %v390 = vstv %s389
          %v392 = vmul.bf16 %v390, %v387
          %v393 = vadd.bf16 %v373, %v392
          %s394 = sadd.s32 %s356, 2
          %s395 = sld [smem:[#allocation5 + %s394]]
          %p397 = scmp.ne.f32.partialorder %s395, %s395
          %s398 = sshrl.u32 %s395, 16
          %s399 = sand.u32 %s398, 1
          %s400 = sadd.s32 32767, %s399
          %s401 = sadd.s32 %s395, %s400
          %s402 = sand.u32 %s401, 4294901760
          %s403 = scalar_select %p397, 2143289344, %s402
          %s405 = sshrl.u32 %s403, 16
          %s406 = scalar_lea.vmem %s308, 16 [#allocation4]
          %v407 = vld [vmem:[%s406] sm:$0xff]
          %s408 = sshll.u32 %s405, 16
          %s409 = sor.u32 %s405, %s408
          %v410 = vstv %s409
          %v412 = vmul.bf16 %v410, %v407
          %v413 = vadd.bf16 %v393, %v412
          %s414 = sadd.s32 %s356, 3
          %s415 = sld [smem:[#allocation5 + %s414]]
          %p417 = scmp.ne.f32.partialorder %s415, %s415
          %s418 = sshrl.u32 %s415, 16
          %s419 = sand.u32 %s418, 1
          %s420 = sadd.s32 32767, %s419
          %s421 = sadd.s32 %s415, %s420
          %s422 = sand.u32 %s421, 4294901760
          %s423 = scalar_select %p417, 2143289344, %s422
          %s425 = sshrl.u32 %s423, 16
          %s426 = scalar_lea.vmem %s308, 24 [#allocation4]
          %v427 = vld [vmem:[%s426] sm:$0xff]
          %s428 = sshll.u32 %s425, 16
          %s429 = sor.u32 %s425, %s428
          %v430 = vstv %s429
          %v432 = vmul.bf16 %v430, %v427
          %v433 = vadd.bf16 %v413, %v432
          %s434 = sadd.s32 %s356, 4
          %s435 = sld [smem:[#allocation5 + %s434]]
          %p437 = scmp.ne.f32.partialorder %s435, %s435
          %s438 = sshrl.u32 %s435, 16
          %s439 = sand.u32 %s438, 1
          %s440 = sadd.s32 32767, %s439
          %s441 = sadd.s32 %s435, %s440
          %s442 = sand.u32 %s441, 4294901760
          %s443 = scalar_select %p437, 2143289344, %s442
          %s445 = sshrl.u32 %s443, 16
          %s446 = scalar_lea.vmem %s308, 32 [#allocation4]
          %v447 = vld [vmem:[%s446] sm:$0xff]
          %s448 = sshll.u32 %s445, 16
          %s449 = sor.u32 %s445, %s448
          %v450 = vstv %s449
          %v452 = vmul.bf16 %v450, %v447
          %v453 = vadd.bf16 %v433, %v452
          %s454 = sadd.s32 %s356, 5
          %s455 = sld [smem:[#allocation5 + %s454]]
          %p457 = scmp.ne.f32.partialorder %s455, %s455
          %s458 = sshrl.u32 %s455, 16
          %s459 = sand.u32 %s458, 1
          %s460 = sadd.s32 32767, %s459
          %s461 = sadd.s32 %s455, %s460
          %s462 = sand.u32 %s461, 4294901760
          %s463 = scalar_select %p457, 2143289344, %s462
          %s465 = sshrl.u32 %s463, 16
          %s466 = scalar_lea.vmem %s308, 40 [#allocation4]
          %v467 = vld [vmem:[%s466] sm:$0xff]
          %s468 = sshll.u32 %s465, 16
          %s469 = sor.u32 %s465, %s468
          %v470 = vstv %s469
          %v472 = vmul.bf16 %v470, %v467
          %v473 = vadd.bf16 %v453, %v472
          %s474 = sadd.s32 %s356, 6
          %s475 = sld [smem:[#allocation5 + %s474]]
          %p477 = scmp.ne.f32.partialorder %s475, %s475
          %s478 = sshrl.u32 %s475, 16
          %s479 = sand.u32 %s478, 1
          %s480 = sadd.s32 32767, %s479
          %s481 = sadd.s32 %s475, %s480
          %s482 = sand.u32 %s481, 4294901760
          %s483 = scalar_select %p477, 2143289344, %s482
          %s485 = sshrl.u32 %s483, 16
          %s486 = scalar_lea.vmem %s308, 48 [#allocation4]
          %v487 = vld [vmem:[%s486] sm:$0xff]
          %s488 = sshll.u32 %s485, 16
          %s489 = sor.u32 %s485, %s488
          %v490 = vstv %s489
          %v492 = vmul.bf16 %v490, %v487
          %v493 = vadd.bf16 %v473, %v492
          %s494 = sadd.s32 %s356, 7
          %s495 = sld [smem:[#allocation5 + %s494]]
          %p497 = scmp.ne.f32.partialorder %s495, %s495
          %s498 = sshrl.u32 %s495, 16
          %s499 = sand.u32 %s498, 1
          %s500 = sadd.s32 32767, %s499
          %s501 = sadd.s32 %s495, %s500
          %s502 = sand.u32 %s501, 4294901760
          %s503 = scalar_select %p497, 2143289344, %s502
          %s505 = sshrl.u32 %s503, 16
          %s506 = scalar_lea.vmem %s308, 56 [#allocation4]
          %v507 = vld [vmem:[%s506] sm:$0xff]
          %s508 = sshll.u32 %s505, 16
          %s509 = sor.u32 %s505, %s508
          %v510 = vstv %s509
          %v512 = vmul.bf16 %v510, %v507
          %v513 = vadd.bf16 %v493, %v512
          %s514 = sadd.s32 %s356, 8
          %s515 = sld [smem:[#allocation5 + %s514]]
          %p517 = scmp.ne.f32.partialorder %s515, %s515
          %s518 = sshrl.u32 %s515, 16
          %s519 = sand.u32 %s518, 1
          %s520 = sadd.s32 32767, %s519
          %s521 = sadd.s32 %s515, %s520
          %s522 = sand.u32 %s521, 4294901760
          %s523 = scalar_select %p517, 2143289344, %s522
          %s525 = sshrl.u32 %s523, 16
          %s526 = scalar_lea.vmem %s308, 64 [#allocation4]
          %v527 = vld [vmem:[%s526] sm:$0xff]
          %s528 = sshll.u32 %s525, 16
          %s529 = sor.u32 %s525, %s528
          %v530 = vstv %s529
          %v532 = vmul.bf16 %v530, %v527
          %v533 = vadd.bf16 %v513, %v532
          %s534 = sld [smem:[#allocation7 + %s351]]
          %p536 = scmp.ne.f32.partialorder %s534, %s534
          %s537 = sshrl.u32 %s534, 16
          %s538 = sand.u32 %s537, 1
          %s539 = sadd.s32 32767, %s538
          %s540 = sadd.s32 %s534, %s539
          %s541 = sand.u32 %s540, 4294901760
          %s542 = scalar_select %p536, 2143289344, %s541
          %s544 = sshrl.u32 %s542, 16
          %s545 = sshll.u32 %s544, 16
          %s546 = sor.u32 %s544, %s545
          %v547 = vstv %s546
          %v549 = vadd.bf16 %v533, %v547
          %v550 = vmax.bf16 %v549, 0
          %v551 = vld [vmem:[#allocation2] sm:$0xff]
          %s552 = smul.u32 %s351, 29
          %s553 = smul.addr %s552, 4
          %s554 = scalar_lea.vmem %s4, %s553
          %v555 = vld [vmem:[%s554] sm:$0xf]
          %v556 = vld [vmem:[%s554 + $0x4] sm:$0xf]
          %v557 = vld [vmem:[%s554 + $0x8] sm:$0xf]
          %v558 = vld [vmem:[%s554 + $0xc] sm:$0xf]
          %v559 = vld [vmem:[%s554 + $0x10] sm:$0xf]
          %v560 = vld [vmem:[%s554 + $0x14] sm:$0xf]
          %v561 = vld [vmem:[%s554 + $0x18] sm:$0xf]
          %v562 = vld [vmem:[%s554 + $0x1c] sm:$0xf]
          %v563 = vld [vmem:[%s554 + $0x20] sm:$0xf]
          %v564 = vld [vmem:[%s554 + $0x24] sm:$0xf]
          %v565 = vld [vmem:[%s554 + $0x28] sm:$0xf]
          %v566 = vld [vmem:[%s554 + $0x2c] sm:$0xf]
          %v567 = vld [vmem:[%s554 + $0x30] sm:$0xf]
          %v568 = vld [vmem:[%s554 + $0x34] sm:$0xf]
          %v569 = vld [vmem:[%s554 + $0x38] sm:$0xf]
          %v570 = vld [vmem:[%s554 + $0x3c] sm:$0xf]
          %v571 = vld [vmem:[%s554 + $0x40] sm:$0xf]
          %v572 = vld [vmem:[%s554 + $0x44] sm:$0xf]
          %v573 = vld [vmem:[%s554 + $0x48] sm:$0xf]
          %v574 = vld [vmem:[%s554 + $0x4c] sm:$0xf]
          %v575 = vld [vmem:[%s554 + $0x50] sm:$0xf]
          %v576 = vld [vmem:[%s554 + $0x54] sm:$0xf]
          %v577 = vld [vmem:[%s554 + $0x58] sm:$0xf]
          %v578 = vld [vmem:[%s554 + $0x5c] sm:$0xf]
          %v579 = vld [vmem:[%s554 + $0x60] sm:$0xf]
          %v580 = vld [vmem:[%s554 + $0x64] sm:$0xf]
          %v581 = vld [vmem:[%s554 + $0x68] sm:$0xf]
          %v582 = vld [vmem:[%s554 + $0x6c] sm:$0xf]
          %v583 = vld [vmem:[%s554 + $0x70] sm:$0x1]
          %v585 = vunpack.c.l.b16 %v550
          %v586 = vunpack.c.h.b16 %v550
          %v587 = vpack.c.b16 %v585, %v585
          %v588 = vpack.c.b16 %v586, %v586
          %v619 = vunpack.c.l.b16 %v555
          %v620 = vunpack.c.l.b16 %v556
          %v621 = vunpack.c.l.b16 %v557
          %v622 = vunpack.c.l.b16 %v558
          %v623 = vunpack.c.l.b16 %v559
          %v624 = vunpack.c.l.b16 %v560
          %v625 = vunpack.c.l.b16 %v561
          %v626 = vunpack.c.l.b16 %v562
          %v627 = vunpack.c.l.b16 %v563
          %v628 = vunpack.c.l.b16 %v564
          %v629 = vunpack.c.l.b16 %v565
          %v630 = vunpack.c.l.b16 %v566
          %v631 = vunpack.c.l.b16 %v567
          %v632 = vunpack.c.l.b16 %v568
          %v633 = vunpack.c.l.b16 %v569
          %v634 = vunpack.c.l.b16 %v570
          %v635 = vunpack.c.l.b16 %v571
          %v636 = vunpack.c.l.b16 %v572
          %v637 = vunpack.c.l.b16 %v573
          %v638 = vunpack.c.l.b16 %v574
          %v639 = vunpack.c.l.b16 %v575
          %v640 = vunpack.c.l.b16 %v576
          %v641 = vunpack.c.l.b16 %v577
          %v642 = vunpack.c.l.b16 %v578
          %v643 = vunpack.c.l.b16 %v579
          %v644 = vunpack.c.l.b16 %v580
          %v645 = vunpack.c.l.b16 %v581
          %v646 = vunpack.c.l.b16 %v582
          %v647 = vunpack.c.l.b16 %v583
          %v648 = vpack.c.b16 %v620, %v619
          %v649 = vpack.c.b16 %v622, %v621
          %v650 = vpack.c.b16 %v624, %v623
          %v651 = vpack.c.b16 %v626, %v625
          %v652 = vpack.c.b16 %v628, %v627
          %v653 = vpack.c.b16 %v630, %v629
          %v654 = vpack.c.b16 %v632, %v631
          %v655 = vpack.c.b16 %v634, %v633
          %v656 = vpack.c.b16 %v636, %v635
          %v657 = vpack.c.b16 %v638, %v637
          %v658 = vpack.c.b16 %v640, %v639
          %v659 = vpack.c.b16 %v642, %v641
          %v660 = vpack.c.b16 %v644, %v643
          %v661 = vpack.c.b16 %v646, %v645
          %v662 = vpack.c.b16 %v647, %v647
          %vm677 = vcmask 793600
          %v679 = vsel %vm677, %v588, 0
          %vm681 = vcmask 1040384
          %v682 = vsel 0, 4294967295, 65535
          %v683 = vsel %vm681, %v682, 0
          %v685 = vand.u32 %v662, %v683
          %687 = vmatprep.subr.bf16.mxu0 0
          %688 = vmatpush1.bf16.msra.mxu0 %v648
          %689 = vmatprep.subr.bf16.mxu0 0
          %690 = vmatpush1.bf16.msra.mxu0 %v649
          %691 = vmatprep.subr.bf16.mxu0 0
          %692 = vmatpush1.bf16.msra.mxu0 %v650
          %693 = vmatprep.subr.bf16.mxu0 0
          %694 = vmatpush1.bf16.msra.mxu0 %v651
          %695 = vmatprep.subr.bf16.mxu0 0
          %696 = vmatpush1.bf16.msra.mxu0 %v652
          %697 = vmatprep.subr.bf16.mxu0 0
          %698 = vmatpush1.bf16.msra.mxu0 %v653
          %699 = vmatprep.subr.bf16.mxu0 0
          %700 = vmatpush1.bf16.msra.mxu0 %v654
          %701 = vmatprep.subr.bf16.mxu0 0
          %702 = vmatpush1.bf16.msra.mxu0 %v655
          %703 = vmatprep.subr.bf16.mxu0 0
          %704 = vmatpush1.bf16.msra.mxu0 %v656
          %705 = vmatprep.subr.bf16.mxu0 0
          %706 = vmatpush1.bf16.msra.mxu0 %v657
          %707 = vmatprep.subr.bf16.mxu0 0
          %708 = vmatpush1.bf16.msra.mxu0 %v658
          %709 = vmatprep.subr.bf16.mxu0 0
          %710 = vmatpush1.bf16.msra.mxu0 %v659
          %711 = vmatprep.subr.bf16.mxu0 0
          %712 = vmatpush1.bf16.msra.mxu0 %v660
          %713 = vmatprep.subr.bf16.mxu0 0
          %714 = vmatpush1.bf16.msra.mxu0 %v661
          %715 = vmatprep.subr.bf16.mxu0 0
          %716 = vmatpush1.bf16.msra.mxu0 %v685
          %717 = vmatprep.subr.bf16.mxu0 0
          %718 = vmatpush1.bf16.msra.mxu0 0
          %719 = vmatprep.mubr.bf16.mxu0 %v679
          %720 = vmatmul.mubr.bf16.gmra.mrb[0].mxu0 %v587
          %v721 = vpop.f32.mrb[0].mxu0
          %v722 = vadd.f32 0.0, %v721
          %v723 = vpop.f32.mrb[0].mxu0
          %v724 = vpop.f32.mrb[0].mxu0
          %v725 = vpop.f32.mrb[0].mxu0
          %726 = vdwg.mxu0
          %v727 = vadd.f32 %v551, %v722
          %728 = vst.msk [vmem:[#allocation2] sm:$0xff] %vm348, %v727
        $region95: #{basic_qnn_forward.1} parent=77 // loop_footer
          %s355 = sadd.s32 1, %s351
        $region96: #{basic_qnn_forward.1} parent=77 // loop_footer_branch
          %350 = sbr.rel target = $region92
        $region97: #{basic_qnn_forward.1} parent=77 // loop_exit
          _
        %v729 = vld [vmem:[%s5] sm:$0x1]
        %v730 = vld [vmem:[%s5 + $0x1] sm:$0x1]
        %v731 = vld [vmem:[%s5 + $0x2] sm:$0x1]
        %v732 = vld [vmem:[#allocation2] sm:$0xff]
        %v733 = vlaneseq
        %v734 = vshrl.u32 %v733, 7
        %v735 = vsub.s32 0, %v734
        %v736 = vrot.slane %v729, %v735
        %v737 = vadd.f32 %v732, %v736
        %v738 = vtanh.pop %v737
        %v739 = vlaneseq
        %v740 = vshrl.u32 %v739, 7
        %v741 = vsub.s32 0, %v740
        %v742 = vrot.slane %v730, %v741
        %v743 = vadd.f32 %v738, %v742
        %v744 = vand.u32 2147483647, %v743
        %vm745 = vcmp.le.f32.partialorder %v744, 0.7853982
        %vm746 = vcmp.lt.s32.totalorder %v743, 0
        %v747 = vand.u32 %v743, 2139095040
        %v748 = vshrl.u32 %v747, 23
        %v749 = vsub.s32 %v748, 127
        %v750 = vand.u32 2147483647, %v743
        %v751 = vand.u32 %v750, 8388607
        %v752 = vor.u32 %v751, 8388608
        %v753 = vsub.s32 0, %v752
        %v754 = vadd.s32 %v749, 1
        %vm755 = vcmp.gt.s32.totalorder %v754, 0
        %v756 = vsel %vm755, %v754, 0
        %v757 = vshrl.u32 %v756, 5
        %v758 = vand.u32 %v756, 31
        %v759 = vsub.s32 32, %v758
        %v760 = vshrl.u32 683565275, %v759
        %v761 = vshll.u32 683565275, %v758
        %v762 = vshrl.u32 2475754826, %v759
        %v763 = vor.u32 %v761, %v762
        %v764 = vshll.u32 2475754826, %v758
        %v765 = vshrl.u32 2131351028, %v759
        %v766 = vor.u32 %v764, %v765
        %v767 = vshll.u32 2131351028, %v758
        %v768 = vshrl.u32 2102212464, %v759
        %v769 = vor.u32 %v767, %v768
        %v770 = vshll.u32 2102212464, %v758
        %v771 = vshrl.u32 920167782, %v759
        %v772 = vor.u32 %v770, %v771
        %v773 = vshll.u32 920167782, %v758
        %v774 = vshrl.u32 1326507024, %v759
        %v775 = vor.u32 %v773, %v774
        %vm776 = vcmp.lt.s32.totalorder %v757, 1
        %vm777 = vcmp.lt.s32.totalorder %v757, 2
        %vm778 = vcmp.lt.s32.totalorder %v757, 3
        %vm779 = vcmp.lt.s32.totalorder %v757, 4
        %v780 = vsel %vm776, %v760, %v763
        %v781 = vsel %vm779, %v769, 2102212464
        %v782 = vsel %vm778, %v766, %v781
        %v783 = vsel %vm777, %v780, %v782
        %v784 = vsel %vm776, %v763, %v766
        %v785 = vsel %vm779, %v772, 920167782
        %v786 = vsel %vm778, %v769, %v785
        %v787 = vsel %vm777, %v784, %v786
        %v788 = vsel %vm776, %v766, %v769
        %v789 = vsel %vm779, %v775, 1326507024
        %v790 = vsel %vm778, %v772, %v789
        %v791 = vsel %vm777, %v788, %v790
        %v792 = vshll.u32 %v752, 8
        %v793 = vmul.u32.u64.compose %v792, %v791
        %v794 = vextract.low.u32 %v793
        %v795 = vextract.high.u32 %v793
        %v796 = vmul.u32.u64.compose %v792, %v787
        %v797 = vextract.low.u32 %v796
        %v798 = vextract.high.u32 %v796
        %v799 = vmul.u32 %v792, %v783
        %v800 = vadd.s32 %v795, %v797
        %vm801 = vc.u32 %v795, %v797
        %v802 = vadd.s32 %v798, 1
        %v803 = vsel %vm801, %v802, %v798
        %v804 = vadd.s32 %v799, %v803
        %v805 = vadd.s32 %v804, 536870912
        %v806 = vshrl.u32 %v805, 30
        %v807 = vshll.u32 %v806, 30
        %v808 = vsub.s32 %v804, %v807
        %vm809 = vcmp.lt.s32.totalorder %v808, 0
        %v810 = vsub.s32 0, %v808
        %v811 = vsel %vm809, %v810, %v808
        %v812 = vclz %v811
        %v813 = vsub.s32 %v812, 2
        %vm814 = vcmp.gt.s32.totalorder 0, %v813
        %v815 = vsel %vm814, 0, %v813
        %v816 = vsub.s32 32, %v815
        %v817 = vshll.u32 %v808, %v815
        %v818 = vshrl.u32 %v800, %v816
        %v819 = vor.u32 %v817, %v818
        %v820 = vsub.s32 4294967266, %v815
        %v821 = vadd.s32 %v820, 127
        %v822 = vshll.u32 %v821, 23
        %v823 = vor.u32 4788187, %v822
        %v824 = vand.u32 2147483647, %v823
        %v826 = vcvt.s32.f32 %v819
        %v827 = vmul.f32 %v826, %v824
        %v828 = vxor.u32 %v827, 2147483648
        %v829 = vsel %vm746, %v828, %v827
        %v830 = vsub.s32 4, %v806
        %v831 = vsel %vm746, %v830, %v806
        %v832 = vsel %vm745, %v743, %v829
        %v833 = vsel %vm745, 0, %v831
        %v834 = vcosq.f32.pop %v832
        %v835 = vsinq.f32.pop %v832
        %vm836 = vweird.f32 %v743
        %v837 = vand.u32 %v833, 3
        %vm838 = vcmp.lt.s32.totalorder %v837, 2
        %vm839 = vcmp.eq.s32.totalorder %v837, 0
        %v840 = vxor.u32 %v835, 2147483648
        %v841 = vsel %vm839, %v834, %v840
        %vm842 = vcmp.eq.s32.totalorder %v837, 2
        %v843 = vxor.u32 %v834, 2147483648
        %v844 = vsel %vm842, %v843, %v835
        %v845 = vsel %vm838, %v841, %v844
        %v846 = vsel %vm836, nan, %v845
        %v847 = vlaneseq
        %v848 = vshrl.u32 %v847, 7
        %v849 = vsub.s32 0, %v848
        %v850 = vrot.slane %v731, %v849
        %v851 = vmul.f32 %v846, %v850
        %v852 = vsel %vm348, %v851, 0.0
        %853 = vadd.xlane.f32.xlu0 %v852
        %v854 = vpop.xlane.xlu0 %853
        %s855 = sld [smem:[#allocation3]]
        %v856 = vstv %s855
        %v857 = vadd.f32 %v854, %v856
        %v858 = vxor.u32 %v857, 2147483648
        %v859 = vmul.f32 %v858, 1.442695
        %v860 = vpow.pop %v859
        %v861 = vadd.f32 %v860, 1.0
        %v862 = vrcp.pop %v861
        %v863 = vmul.f32 1.0, %v862
        %vm864 = vcmask 7168
        %865 = vst.msk [vmem:[%s346] sm:$0xff] %vm864, %v863
        %p866 = scmp.lt.s32.totalorder %s20, 1
        %s867 = scalar_select %p866, %s20, 1
        %s868 = smul.addr %s867, 8
        %s869 = scalar_lea.vmem %s6, %s868
        // Predicated region
        $region98: #{basic_qnn_forward.1} parent=77 // pred_check
          %p870 = pneg %p169
        $region99: #{basic_qnn_forward.1} parent=77 // pred_check_branch
          %872 = sbr.rel (%p870) target = $region101
        $region100: #{basic_qnn_forward.1} parent=77 // pred_region
          _
        $region101: #{basic_qnn_forward.1} parent=77 // pred_fallthru
          _
      $region78: #{basic_qnn_forward.1} parent=5 // pred_fallthru
        _
      %p873 = scmp.le.s32.totalorder 2, %s15
      // Predicated region
      $region102: #{basic_qnn_forward.1} parent=5 // pred_check
        %p874 = pneg %p873
      $region103: #{basic_qnn_forward.1} parent=5 // pred_check_branch
        %876 = sbr.rel (%p874) target = $region105
      $region104: #{basic_qnn_forward.1} parent=5 // pred_region
        %s877 = ssub.s32 %s15, 2
        // Predicated region
        $region106: #{basic_qnn_forward.1} parent=104 // pred_check
          %p878 = pneg %p175
        $region107: #{basic_qnn_forward.1} parent=104 // pred_check_branch
          %880 = sbr.rel (%p878) target = $region109
        $region108: #{basic_qnn_forward.1} parent=104 // pred_region
          %p881 = scmp.lt.s32.totalorder %s21, 1
          %s882 = scalar_select %p881, %s21, 1
          %s883 = smul.addr %s882, 8
          %s884 = scalar_lea.vmem %s6, %s883
        $region109: #{basic_qnn_forward.1} parent=104 // pred_fallthru
          _
      $region105: #{basic_qnn_forward.1} parent=5 // pred_fallthru
        _
    $region6: #{basic_qnn_forward.1} parent=1 // loop_footer
      %s19 = sadd.s32 1, %s15
    $region7: #{basic_qnn_forward.1} parent=1 // loop_footer_branch
      %14 = sbr.rel target = $region3
    $region8: #{basic_qnn_forward.1} parent=1 // loop_exit
      _
    %885 = vsyncpa [#allocation6], 1
    %s886 = scalar_lea.sflag [#allocation6], 1
    %887 = vsyncpa %s886, 1
    %888 = vsyncpa [#allocation8], 1

</llo_original>
